<compile_context>
chip_gen: v5e
topology: v5e:2x2
jax: 0.10.0
libtpu: 0.0.40
codegen_flags: <defaults>
</compile_context>

<pallas_src>
import jax
import jax.numpy as jnp
from jax.experimental import pallas as pl
from jax.experimental.pallas import tpu as pltpu

K = 3          # kernel_size
PAD = K // 2   # 'zeros' padding = 1


def _conv_bias_relu_kernel(cols_ref, w_ref, b_ref, o_ref):
    # cols_ref: (1, K*K*Cin, H*W)  bf16  -- im2col'ed image (lane dim = H*W, lane-dense)
    # w_ref:    (Cout, K*K*Cin)    bf16  -- flattened conv weights
    # b_ref:    (Cout, 1)          f32
    # o_ref:    (1, Cout, H*W)     f32   -- NCHW-flattened output (lane-dense stores)
    acc = jnp.dot(w_ref[...], cols_ref[0],
                  preferred_element_type=jnp.float32)       # one 36-deep MXU contraction
    acc = acc + b_ref[...]                                  # f32 bias, broadcast over lanes
    o_ref[0] = jnp.maximum(acc, 0.0).astype(o_ref.dtype)    # f32 ReLU, dense store


def aggregation_block_forward(x_nchw, w_oihw, bias):
    """Eval-mode forward of AggregationBlock. x_nchw: (N, Cin, H, W) f32 -> (N, Cout, H, W) f32."""
    N, Cin, H, W = x_nchw.shape
    Cout = w_oihw.shape[0]
    KKC = K * K * Cin
    HW = H * W

    # Wrapper glue: zero-pad + im2col as a single fused XLA gather; NCHW kept end-to-end.
    x_pad = jnp.pad(x_nchw, ((0, 0), (0, 0), (PAD, PAD), (PAD, PAD)))
    cols = jnp.concatenate(
        [x_pad[:, :, dy:dy + H, dx:dx + W] for dy in range(K) for dx in range(K)],
        axis=1,
    ).reshape(N, KKC, HW)                                          # channel order: (dy, dx, cin)
    w2d = jnp.transpose(w_oihw, (0, 2, 3, 1)).reshape(Cout, KKC)   # matching (dy, dx, cin) order

    cols_bf16 = cols.astype(jnp.bfloat16)    # MXU operands in bf16,
    w2d_bf16 = w2d.astype(jnp.bfloat16)      # accumulation stays f32
    b2d = bias.reshape(Cout, 1).astype(jnp.float32)

    out_flat = pl.pallas_call(
        _conv_bias_relu_kernel,
        out_shape=jax.ShapeDtypeStruct((N, Cout, HW), jnp.float32),
        grid_spec=pltpu.PrefetchScalarGridSpec(
            num_scalar_prefetch=0,
            grid=(N,),                                 # 2 parallel steps -> both v7x TensorCores
            in_specs=[
                pl.BlockSpec((1, KKC, HW), lambda n: (n, 0, 0)),
                pl.BlockSpec((Cout, KKC), lambda n: (0, 0)),
                pl.BlockSpec((Cout, 1), lambda n: (0, 0)),
            ],
            out_specs=pl.BlockSpec((1, Cout, HW), lambda n: (n, 0, 0)),
        ),
        compiler_params=pltpu.CompilerParams(
            dimension_semantics=("parallel",),
        ),
    )(cols_bf16, w2d_bf16, b2d)

    return out_flat.reshape(N, Cout, H, W)   # free reshape; output stays NCHW like PyTorch


if __name__ == "__main__":
    # Small shapes consistent with the module's forward (NCHW input).
    N, Cin, Cout, H, W = 2, 4, 8, 16, 16

    key = jax.random.PRNGKey(0)
    kx, kw, kb = jax.random.split(key, 3)
    x = jax.random.normal(kx, (N, Cin, H, W), dtype=jnp.float32)
    # Deterministic parameter init (synthetic; shapes per nn.Conv2d(Cin, Cout, 3)).
    w = jax.random.normal(kw, (Cout, Cin, K, K), dtype=jnp.float32) * 0.1
    b = jax.random.normal(kb, (Cout,), dtype=jnp.float32) * 0.1

    out = jax.jit(aggregation_block_forward)(x, w, b)
    out = jax.block_until_ready(out)

    # Reference: conv + bias + ReLU using the SAME bf16-rounded operands the kernel's MXU
    # path uses, so the check isolates kernel correctness from the intentional bf16 cast.
    x_r = x.astype(jnp.bfloat16).astype(jnp.float32)
    w_r = w.astype(jnp.bfloat16).astype(jnp.float32)
    ref = jax.lax.conv_general_dilated(
        x_r, w_r, window_strides=(1, 1), padding=((PAD, PAD), (PAD, PAD)),
        dimension_numbers=("NCHW", "OIHW", "NCHW"),
        precision=jax.lax.Precision.HIGHEST,
    ) + b.reshape(1, Cout, 1, 1)
    ref = jnp.maximum(ref, 0.0)
    assert jnp.allclose(out, ref, atol=1e-3, rtol=1e-3), "mismatch vs reference"

    print("KERNEL_OK")
</pallas_src>

<mosaic_0001>
module attributes {stable_mosaic.version = 11 : i64} {
  func.func @_conv_bias_relu_kernel(%arg0: i32, %arg1: memref<1x36x256xbf16, #tpu.memory_space<vmem>>, %arg2: memref<8x36xbf16, #tpu.memory_space<vmem>>, %arg3: memref<8x1xf32, #tpu.memory_space<vmem>>, %arg4: memref<1x8x256xf32, #tpu.memory_space<vmem>>) attributes {dimension_semantics = [#tpu.dimension_semantics<parallel>], iteration_bounds = array<i64: 2>, scalar_prefetch = 0 : i64, scratch_operands = 0 : i64, tpu.core_type = #tpu.core_type<tc>, window_params = [{transform_indices = @transform_0, window_bounds = array<i64: 1, 36, 256>}, {pipeline_mode = #tpu.pipeline_mode<synchronous>, transform_indices = @transform_1, window_bounds = array<i64: 8, 36>}, {pipeline_mode = #tpu.pipeline_mode<synchronous>, transform_indices = @transform_2, window_bounds = array<i64: 8, 1>}, {transform_indices = @transform_3, window_bounds = array<i64: 1, 8, 256>}]} {
    %c0 = arith.constant 0 : index
    %c0_0 = arith.constant 0 : index
    %0 = vector.load %arg2[%c0, %c0_0] : memref<8x36xbf16, #tpu.memory_space<vmem>>, vector<8x36xbf16>
    %c0_1 = arith.constant 0 : index
    %c0_2 = arith.constant 0 : index
    %c0_3 = arith.constant 0 : index
    %1 = vector.load %arg1[%c0_1, %c0_2, %c0_3] : memref<1x36x256xbf16, #tpu.memory_space<vmem>>, vector<1x36x256xbf16>
    %2 = vector.shape_cast %1 : vector<1x36x256xbf16> to vector<36x256xbf16>
    %cst = arith.constant dense<0.000000e+00> : vector<8x256xf32>
    %3 = tpu.matmul %0, %2, %cst {dimension_numbers = #tpu.dot_dimension_numbers<[1], [0], [0], [1], [0, 0, 1, 1], [], []>} : vector<8x36xbf16>, vector<36x256xbf16>, vector<8x256xf32> -> vector<8x256xf32>
    %c0_4 = arith.constant 0 : index
    %c0_5 = arith.constant 0 : index
    %4 = vector.load %arg3[%c0_4, %c0_5] : memref<8x1xf32, #tpu.memory_space<vmem>>, vector<8x1xf32>
    %5 = vector.broadcast %4 : vector<8x1xf32> to vector<8x256xf32>
    %6 = arith.addf %3, %5 : vector<8x256xf32>
    %cst_6 = arith.constant 0.000000e+00 : f32
    %7 = vector.broadcast %cst_6 : f32 to vector<8x256xf32>
    %8 = arith.maximumf %6, %7 : vector<8x256xf32>
    %c0_7 = arith.constant 0 : index
    %c0_8 = arith.constant 0 : index
    %c0_9 = arith.constant 0 : index
    %9 = vector.load %arg4[%c0_7, %c0_8, %c0_9] : memref<1x8x256xf32, #tpu.memory_space<vmem>>, vector<1x8x256xf32>
    %10 = vector.shape_cast %9 : vector<1x8x256xf32> to vector<8x256xf32>
    %11 = vector.shape_cast %8 : vector<8x256xf32> to vector<1x8x256xf32>
    tpu.vector_store %arg4[%c0_7, %c0_8, %c0_9], %11 {strides = array<i32>} : memref<1x8x256xf32, #tpu.memory_space<vmem>>, vector<1x8x256xf32>,
    return
  }
  func.func @transform_0(%arg0: i32) -> (i32, i32, i32) {
    %c0_i32 = arith.constant 0 : i32
    %c0_i32_0 = arith.constant 0 : i32
    %c0_i32_1 = arith.constant 0 : i32
    return %arg0, %c0_i32, %c0_i32_0 : i32, i32, i32
  }
  func.func @transform_1(%arg0: i32) -> (i32, i32) {
    %c0_i32 = arith.constant 0 : i32
    %c0_i32_0 = arith.constant 0 : i32
    %c0_i32_1 = arith.constant 0 : i32
    return %c0_i32, %c0_i32_0 : i32, i32
  }
  func.func @transform_2(%arg0: i32) -> (i32, i32) {
    %c0_i32 = arith.constant 0 : i32
    %c0_i32_0 = arith.constant 0 : i32
    %c0_i32_1 = arith.constant 0 : i32
    return %c0_i32, %c0_i32_0 : i32, i32
  }
  func.func @transform_3(%arg0: i32) -> (i32, i32, i32) {
    %c0_i32 = arith.constant 0 : i32
    %c0_i32_0 = arith.constant 0 : i32
    %c0_i32_1 = arith.constant 0 : i32
    return %arg0, %c0_i32, %c0_i32_0 : i32, i32, i32
  }
}

</mosaic_0001>

<llo_original>
// kernel: aggregation_block_forward.1
$region0: #{aggregation_block_forward.1}
  #allocation0 [shape = 'u32[]', space=smem, size = 0x4, offset = 0x4, fixed_abs, tag = 'smem constant byte address 0x4 - core index']
  #allocation1 [shape = 'u32[72,128]{1,0:T(1,128)}', space=vmem, size = 0x9000, scoped, tag = 'internal scratch']
  %s0 = inlined_call_operand.vmem [shape: bf16[2,36,256], index: 0, kind: input, shape index: {}]
  %s1 = inlined_call_operand.vmem [shape: bf16[8,36], index: 1, kind: input, shape index: {}]
  %s2 = inlined_call_operand.vmem [shape: f32[8,1], index: 2, kind: input, shape index: {}]
  %s3 = inlined_call_operand.vmem [shape: f32[2,8,256], index: 3, kind: output, shape index: {}]
  %s4 = sld [smem:[#allocation0]]
  $region45: #{aggregation_block_forward.1} parent=0
    _
  %s6 = ssub.s32 1, %s4
  %s7 = scalar_select 0, %s6, %s4
  loop: start=0, step=1, limit=4
  $region2: #{aggregation_block_forward.1} parent=0 // loop_pre_header
    _
  $region3: #{aggregation_block_forward.1} parent=0 // loop_header
    %s9 = sphi 0, %s13
    %p10 = scmp.ge.s32.totalorder %s9, 4
    %s19 = sphi 0, %s21
    %s22 = sphi 0, %s19
    %s23 = sphi 0, %s22
    %s39 = sphi 0, %s23
    %s43 = sphi 0, %s43
    %s45 = sphi 0, %s43
    %s46 = sphi 0, %s45
    %s60 = sphi 0, %s46
    %s64 = sphi 0, %s64
    %s66 = sphi 0, %s64
    %s67 = sphi 0, %s66
    %s81 = sphi 0, %s67
    %s87 = sphi 0, %s89
    %s90 = sphi 0, %s87
    %s91 = sphi 0, %s90
    %s107 = sphi 0, %s91
  $region4: #{aggregation_block_forward.1} parent=0 // loop_header_branch
    %12 = sbr.rel (%p10) target = $region8
  $region5: #{aggregation_block_forward.1} parent=0 // loop_body
    %s14 = ssub.s32 %s9, 1
    %s15 = ssub.s32 %s9, 2
    %s16 = sadd.s32 %s9, 1
    %s17 = ssub.s32 %s9, %s16
    %p18 = scmp.eq.s32.totalorder %s17, 0
    %s20 = sadd.s32 %s19, 1
    %s21 = scalar_select %p18, %s19, %s20
    %p24 = pneg %p18
    %p25 = scmp.eq.s32.totalorder %s9, 1
    %p26 = por %p24, %p25
    %p27 = scmp.ne.s32.totalorder %s19, %s22
    %p28 = scmp.eq.s32.totalorder %s9, 0
    %p29 = por %p27, %p28
    %p30 = scmp.ne.s32.totalorder %s19, %s22
    %p31 = scmp.eq.s32.totalorder %s14, 1
    %p32 = por %p30, %p31
    %p33 = scmp.ne.s32.totalorder %s22, %s23
    %p34 = scmp.eq.s32.totalorder %s14, 0
    %p35 = por %p33, %p34
    %p36 = scmp.ne.s32.totalorder %s22, %s23
    %p37 = scmp.eq.s32.totalorder %s15, 1
    %p38 = por %p36, %p37
    %p40 = scmp.ne.s32.totalorder %s23, %s39
    %p41 = scmp.eq.s32.totalorder %s15, 0
    %p42 = por %p40, %p41
    %s44 = sadd.s32 %s43, 1
    %p47 = scmp.eq.s32.totalorder %s9, 1
    %p48 = scmp.ne.s32.totalorder %s43, %s45
    %p49 = scmp.eq.s32.totalorder %s9, 0
    %p50 = por %p48, %p49
    %p51 = scmp.ne.s32.totalorder %s43, %s45
    %p52 = scmp.eq.s32.totalorder %s14, 1
    %p53 = por %p51, %p52
    %p54 = scmp.ne.s32.totalorder %s45, %s46
    %p55 = scmp.eq.s32.totalorder %s14, 0
    %p56 = por %p54, %p55
    %p57 = scmp.ne.s32.totalorder %s45, %s46
    %p58 = scmp.eq.s32.totalorder %s15, 1
    %p59 = por %p57, %p58
    %p61 = scmp.ne.s32.totalorder %s46, %s60
    %p62 = scmp.eq.s32.totalorder %s15, 0
    %p63 = por %p61, %p62
    %s65 = sadd.s32 %s64, 1
    %p68 = scmp.eq.s32.totalorder %s9, 1
    %p69 = scmp.ne.s32.totalorder %s64, %s66
    %p70 = scmp.eq.s32.totalorder %s9, 0
    %p71 = por %p69, %p70
    %p72 = scmp.ne.s32.totalorder %s64, %s66
    %p73 = scmp.eq.s32.totalorder %s14, 1
    %p74 = por %p72, %p73
    %p75 = scmp.ne.s32.totalorder %s66, %s67
    %p76 = scmp.eq.s32.totalorder %s14, 0
    %p77 = por %p75, %p76
    %p78 = scmp.ne.s32.totalorder %s66, %s67
    %p79 = scmp.eq.s32.totalorder %s15, 1
    %p80 = por %p78, %p79
    %p82 = scmp.ne.s32.totalorder %s67, %s81
    %p83 = scmp.eq.s32.totalorder %s15, 0
    %p84 = por %p82, %p83
    %s85 = ssub.s32 %s9, %s16
    %p86 = scmp.eq.s32.totalorder %s85, 0
    %s88 = sadd.s32 %s87, 1
    %s89 = scalar_select %p86, %s87, %s88
    %p92 = pneg %p86
    %p93 = scmp.eq.s32.totalorder %s9, 1
    %p94 = por %p92, %p93
    %p95 = scmp.ne.s32.totalorder %s87, %s90
    %p96 = scmp.eq.s32.totalorder %s9, 0
    %p97 = por %p95, %p96
    %p98 = scmp.ne.s32.totalorder %s87, %s90
    %p99 = scmp.eq.s32.totalorder %s14, 1
    %p100 = por %p98, %p99
    %p101 = scmp.ne.s32.totalorder %s90, %s91
    %p102 = scmp.eq.s32.totalorder %s14, 0
    %p103 = por %p101, %p102
    %p104 = scmp.ne.s32.totalorder %s90, %s91
    %p105 = scmp.eq.s32.totalorder %s15, 1
    %p106 = por %p104, %p105
    %p108 = scmp.ne.s32.totalorder %s91, %s107
    %p109 = scmp.eq.s32.totalorder %s15, 0
    %p110 = por %p108, %p109
    %p111 = scmp.le.s32.totalorder 1, %s9
    %p112 = scmp.lt.s32.totalorder %s9, 3
    %p113 = pnand %p111, %p112
    %p114 = pneg %p113
    // Predicated region
    $region9: #{aggregation_block_forward.1} parent=5 // pred_check
      _
    $region10: #{aggregation_block_forward.1} parent=5 // pred_check_branch
      %116 = sbr.rel (%p113) target = $region12
    $region11: #{aggregation_block_forward.1} parent=5 // pred_region
      %s117 = ssub.s32 %s9, 1
      // Predicated region
      $region13: #{aggregation_block_forward.1} parent=11 // pred_check
        %p118 = pneg %p56
      $region14: #{aggregation_block_forward.1} parent=11 // pred_check_branch
        %120 = sbr.rel (%p118) target = $region16
      $region15: #{aggregation_block_forward.1} parent=11 // pred_region
        _
      $region16: #{aggregation_block_forward.1} parent=11 // pred_fallthru
        _
      // Predicated region
      $region17: #{aggregation_block_forward.1} parent=11 // pred_check
        %p121 = pneg %p77
      $region18: #{aggregation_block_forward.1} parent=11 // pred_check_branch
        %123 = sbr.rel (%p121) target = $region20
      $region19: #{aggregation_block_forward.1} parent=11 // pred_region
        _
      $region20: #{aggregation_block_forward.1} parent=11 // pred_fallthru
        _
    $region12: #{aggregation_block_forward.1} parent=5 // pred_fallthru
      _
    %p124 = scmp.lt.s32.totalorder %s9, 2
    // Predicated region
    $region21: #{aggregation_block_forward.1} parent=5 // pred_check
      %p125 = pneg %p124
    $region22: #{aggregation_block_forward.1} parent=5 // pred_check_branch
      %127 = sbr.rel (%p125) target = $region24
    $region23: #{aggregation_block_forward.1} parent=5 // pred_region
      // Predicated region
      $region25: #{aggregation_block_forward.1} parent=23 // pred_check
        %p128 = pneg %p29
      $region26: #{aggregation_block_forward.1} parent=23 // pred_check_branch
        %130 = sbr.rel (%p128) target = $region28
      $region27: #{aggregation_block_forward.1} parent=23 // pred_region
        %p131 = scmp.lt.s32.totalorder %s9, 1
        %s132 = scalar_select %p131, %s9, 1
        %s133 = smul.addr %s132, 10
        %s134 = smul.addr %s133, 4
        %s135 = scalar_lea.vmem %s0, %s134
      $region28: #{aggregation_block_forward.1} parent=23 // pred_fallthru
        _
    $region24: #{aggregation_block_forward.1} parent=5 // pred_fallthru
      _
    %p136 = scmp.le.s32.totalorder 1, %s9
    %p137 = scmp.lt.s32.totalorder %s9, 3
    %p138 = pnand %p136, %p137
    %p139 = pneg %p138
    // Predicated region
    $region29: #{aggregation_block_forward.1} parent=5 // pred_check
      _
    $region30: #{aggregation_block_forward.1} parent=5 // pred_check_branch
      %141 = sbr.rel (%p138) target = $region32
    $region31: #{aggregation_block_forward.1} parent=5 // pred_region
      %s142 = ssub.s32 %s9, 1
      %p143 = scmp.lt.s32.totalorder %s14, 1
      %s144 = scalar_select %p143, %s14, 1
      %s145 = smul.addr %s144, 10
      %s146 = smul.addr %s145, 4
      %s147 = scalar_lea.vmem %s0, %s146
      %p148 = pneg %p35
      %p149 = pneg %p32
      %p150 = pneg %p56
      %p151 = pneg %p53
      %p152 = pneg %p77
      %p153 = pneg %p74
      %p154 = pneg %p103
      %p155 = pneg %p100
      %p156 = scmp.lt.s32.totalorder %s14, 1
      %s157 = scalar_select %p156, %s14, 1
      %s158 = smul.addr %s157, 2
      %s159 = smul.addr %s158, 8
      %s160 = scalar_lea.vmem %s3, %s159
      %p161 = scmp.lt.s32.totalorder %s14, 1
      %s162 = scalar_select %p161, %s14, 1
      %s163 = smul.addr %s162, 10
      %s164 = smul.addr %s163, 4
      %s165 = scalar_lea.vmem %s0, %s164
      %p166 = scmp.lt.s32.totalorder %s14, 1
      %s167 = scalar_select %p166, %s14, 1
      %s168 = smul.addr %s167, 2
      %s169 = smul.addr %s168, 8
      %s170 = scalar_lea.vmem %s3, %s169
      %v172 = vld [vmem:[%s1] sm:$0xf]
      %v173 = vld [vmem:[%s165] sm:$0xff]
      %v174 = vld [vmem:[%s165 + $0x8] sm:$0xff]
      %v175 = vld [vmem:[%s165 + $0x10] sm:$0xff]
      %v176 = vld [vmem:[%s165 + $0x18] sm:$0xff]
      %v177 = vld [vmem:[%s165 + $0x20] sm:$0x33]
      %v178 = vld [vmem:[%s2] sm:$0xff]
      %180 = vset.pattern.permute.xlu0 0
      %181 = vperm.xlu0 %180, %v178
      %v182 = vpop.permute.xlu0 %181
      %v189 = vunpack.c.l.b16 %v173
      %v190 = vunpack.c.h.b16 %v173
      %v191 = vunpack.c.l.b16 %v174
      %v192 = vunpack.c.h.b16 %v174
      %v193 = vunpack.c.l.b16 %v175
      %v194 = vunpack.c.h.b16 %v175
      %v195 = vunpack.c.l.b16 %v176
      %v196 = vunpack.c.h.b16 %v176
      %v197 = vunpack.c.l.b16 %v177
      %v198 = vunpack.c.h.b16 %v177
      %v199 = vpack.c.b16 %v191, %v189
      %v200 = vpack.c.b16 %v192, %v190
      %v201 = vpack.c.b16 %v195, %v193
      %v202 = vpack.c.b16 %v196, %v194
      %v203 = vpack.c.b16 %v197, %v197
      %v204 = vpack.c.b16 %v198, %v198
      %vm209 = vcmask 293888
      %v211 = vsel %vm209, %v172, 0
      %vm213 = vcmask 1041408
      %v215 = vsel %vm213, %v203, 0
      %v218 = vsel %vm213, %v204, 0
      %220 = vmatpush.bf16.msra.mxu0 0
      %221 = vmatpush.bf16.msra.mxu0 0
      %222 = vmatpush.bf16.msra.mxu0 0
      %223 = vmatpush.bf16.msra.mxu0 0
      %224 = vmatpush.bf16.msra.mxu0 0
      %225 = vmatpush.bf16.msra.mxu0 %v215
      %226 = vmatpush.bf16.msra.mxu0 %v201
      %227 = vmatpush.bf16.msra.mxu0 %v199
      %228 = vmatmul.bf16.gmra.mxu0 %v211
      %v229 = vpop.f32.mrf.mxu0
      %v230 = vadd.f32 %v182, %v229
      %v231 = vpop.f32.mrf.mxu0
      %232 = vdwg.mxu0
      %233 = vmatpush.bf16.msra.mxu0 0
      %234 = vmatpush.bf16.msra.mxu0 0
      %235 = vmatpush.bf16.msra.mxu0 0
      %236 = vmatpush.bf16.msra.mxu0 0
      %237 = vmatpush.bf16.msra.mxu0 0
      %238 = vmatpush.bf16.msra.mxu0 %v218
      %239 = vmatpush.bf16.msra.mxu0 %v202
      %240 = vmatpush.bf16.msra.mxu0 %v200
      %241 = vmatmul.bf16.gmra.mxu0 %v211
      %v242 = vpop.f32.mrf.mxu0
      %v243 = vadd.f32 %v182, %v242
      %v244 = vpop.f32.mrf.mxu0
      %245 = vdwg.mxu0
      %v246 = vmax.f32 %v230, 0.0
      %v247 = vmax.f32 %v243, 0.0
      %248 = vst [vmem:[%s170] sm:$0xff] %v246
      %249 = vst [vmem:[%s170 + $0x8] sm:$0xff] %v247
      %p250 = scmp.lt.s32.totalorder %s14, 1
      %s251 = scalar_select %p250, %s14, 1
      %s252 = smul.addr %s251, 2
      %s253 = smul.addr %s252, 8
      %s254 = scalar_lea.vmem %s3, %s253
      // Predicated region
      $region33: #{aggregation_block_forward.1} parent=31 // pred_check
        %p255 = pneg %p100
      $region34: #{aggregation_block_forward.1} parent=31 // pred_check_branch
        %257 = sbr.rel (%p255) target = $region36
      $region35: #{aggregation_block_forward.1} parent=31 // pred_region
        _
      $region36: #{aggregation_block_forward.1} parent=31 // pred_fallthru
        _
    $region32: #{aggregation_block_forward.1} parent=5 // pred_fallthru
      _
    %p258 = scmp.le.s32.totalorder 2, %s9
    // Predicated region
    $region37: #{aggregation_block_forward.1} parent=5 // pred_check
      %p259 = pneg %p258
    $region38: #{aggregation_block_forward.1} parent=5 // pred_check_branch
      %261 = sbr.rel (%p259) target = $region40
    $region39: #{aggregation_block_forward.1} parent=5 // pred_region
      %s262 = ssub.s32 %s9, 2
      // Predicated region
      $region41: #{aggregation_block_forward.1} parent=39 // pred_check
        %p263 = pneg %p106
      $region42: #{aggregation_block_forward.1} parent=39 // pred_check_branch
        %265 = sbr.rel (%p263) target = $region44
      $region43: #{aggregation_block_forward.1} parent=39 // pred_region
        %p266 = scmp.lt.s32.totalorder %s15, 1
        %s267 = scalar_select %p266, %s15, 1
        %s268 = smul.addr %s267, 2
        %s269 = smul.addr %s268, 8
        %s270 = scalar_lea.vmem %s3, %s269
      $region44: #{aggregation_block_forward.1} parent=39 // pred_fallthru
        _
    $region40: #{aggregation_block_forward.1} parent=5 // pred_fallthru
      _
  $region6: #{aggregation_block_forward.1} parent=0 // loop_footer
    %s13 = sadd.s32 1, %s9
  $region7: #{aggregation_block_forward.1} parent=0 // loop_footer_branch
    %8 = sbr.rel target = $region3
  $region8: #{aggregation_block_forward.1} parent=0 // loop_exit
    _

</llo_original>
